<compile_context>
chip_gen: v6e
topology: v6e:2x2x1
jax: 0.10.0
libtpu: 0.0.40
codegen_flags: <defaults>
</compile_context>

<pallas_src>
import math
import functools

import jax
import jax.numpy as jnp
from jax import lax
from jax.experimental import pallas as pl
from jax.experimental.pallas import tpu as pltpu


# ----------------------------------------------------------------------------
# Pallas kernel: distances between a tile of windows and the full weight matrix.
#   d(a, b) = sqrt(max(0, |a|^2 + |b|^2 - 2 a.b))
# ----------------------------------------------------------------------------
def _rbf_cdist_kernel(x_ref, w_ref, w2_ref, o_ref, *, use_bf16):
    # x_ref : (K, TM)  tile of flattened windows (K on sublanes, windows on lanes)
    # w_ref : (O,  K)  full RBF weight matrix (resident across grid steps)
    # w2_ref: (O,  1)  precomputed |w|^2 per output channel (hoisted)
    # o_ref : (O, TM)  distances; lane dim = TM (lane-dense stores)
    x = x_ref[...]
    w = w_ref[...]
    # |x|^2: sublane reduce, result already lane-aligned with the (O, TM) output.
    x2 = jnp.sum(x * x, axis=0, keepdims=True)                     # (1, TM)
    if use_bf16:
        # Large-O (compute-bound) layers: bf16 MXU operands, f32 accumulation.
        xw = lax.dot_general(w.astype(jnp.bfloat16), x.astype(jnp.bfloat16),
                             (((1,), (0,)), ((), ())),
                             preferred_element_type=jnp.float32)   # (O, TM)
    else:
        xw = lax.dot_general(w, x, (((1,), (0,)), ((), ())),
                             preferred_element_type=jnp.float32)   # (O, TM)
    d2 = w2_ref[...] + x2 - 2.0 * xw
    o_ref[...] = jnp.sqrt(jnp.maximum(d2, 0.0))


def _round_down_128(x):
    return (x // 128) * 128


@functools.lru_cache(maxsize=None)
def _vmem_capacity_bytes():
    """Per-core VMEM capacity; conservative (v7x 64 MiB) fallback if query fails."""
    try:
        cap = int(pltpu.get_tpu_info().vmem_capacity_bytes)
        if cap > 0:
            return cap
    except Exception:
        pass
    return 64 * (1 << 20)


def _choose_tile_m(L, K, O, capacity_bytes, target=1024):
    """Pick a lane-tile size for the window axis.

    Multiples of 128 (lane-dense stores), capped so the double-buffered windows
    tile + output tile fit in ~half of this generation's VMEM after reserving
    the resident (double-buffered) weight / |w|^2 blocks.
    """
    if L <= 128:
        return L  # full extent (layout rule allows full-dim blocks)
    # Budget: ~half of VMEM minus resident weight (f32, double-buffered).
    budget = capacity_bytes // 2 - 2 * 4 * (O * K + O)
    budget = max(budget, 8 * (1 << 20))
    tile_m = max(128, min(target, _round_down_128(L)))
    # Double-buffered windows tile + double-buffered output tile (f32).
    while tile_m > 128 and 2 * 4 * tile_m * (K + O) > budget:
        tile_m -= 128
    return tile_m


def _rbf_distances_pallas(windows, weight, w2, *, tile_m, use_bf16):
    """windows: (N, K, L) f32, weight: (O, K) f32, w2: (O, 1) f32 -> (N, O, L) f32."""
    N, K, L = windows.shape
    O, Kw = weight.shape
    assert K == Kw

    grid = (N, pl.cdiv(L, tile_m))
    capacity = _vmem_capacity_bytes()

    # VMEM estimate: double-buffered windows + output tiles, resident weight/|w|^2.
    est = 4 * (2 * tile_m * (K + O) + 2 * (O * K + O))
    vmem_limit = int(min((7 * capacity) // 10,
                         max(32 * (1 << 20), est + (16 << 20))))

    kernel = functools.partial(_rbf_cdist_kernel, use_bf16=use_bf16)

    return pl.pallas_call(
        kernel,
        out_shape=jax.ShapeDtypeStruct((N, O, L), jnp.float32),
        grid_spec=pltpu.PrefetchScalarGridSpec(
            num_scalar_prefetch=0,
            grid=grid,
            in_specs=[
                # windows: one batch element, full K (sublanes), one L-tile (lanes)
                pl.BlockSpec((None, K, tile_m), lambda n, l: (n, 0, l)),
                # full weight matrix, resident (constant index map -> DMA'd once)
                pl.BlockSpec((O, K), lambda n, l: (0, 0)),
                # hoisted |w|^2, resident
                pl.BlockSpec((O, 1), lambda n, l: (0, 0)),
            ],
            # output written directly in (N, O, L) order -> no post-transpose
            out_specs=pl.BlockSpec((None, O, tile_m), lambda n, l: (n, 0, l)),
        ),
        compiler_params=pltpu.CompilerParams(
            dimension_semantics=("parallel", "parallel"),
            vmem_limit_bytes=vmem_limit),
    )(windows, weight, w2)


# ----------------------------------------------------------------------------
# Glue: im2col (F.unfold equivalent), kept in unfold's native (N, K, L) layout
# so no transpose is needed before the kernel.
# ----------------------------------------------------------------------------
def _unfold_nchw(x, kh, kw, sh, sw, pad):
    """F.unfold semantics. x: (N, C, H, W) -> (N, C*kh*kw, L), plus (Ho, Wo)."""
    N, C, H, W = x.shape
    xp = jnp.pad(x, ((0, 0), (0, 0), (pad, pad), (pad, pad)))
    Ho = (H + 2 * pad - kh) // sh + 1
    Wo = (W + 2 * pad - kw) // sw + 1
    patches = []
    for i in range(kh):
        for j in range(kw):
            patches.append(xp[:, :, i:i + sh * Ho:sh, j:j + sw * Wo:sw])  # (N,C,Ho,Wo)
    p = jnp.stack(patches, axis=2)                 # (N, C, kh*kw, Ho, Wo)
    cols = p.reshape(N, C * kh * kw, Ho * Wo)      # (N, K, L), channel-major like F.unfold
    return cols, Ho, Wo


class RBFConv2dPallas:
    """JAX/Pallas re-implementation of RBF_Conv2d (is_weight_cdist=False path)."""

    def __init__(self, in_channels, out_channels, kernel_size, stride=1,
                 padding=0, initial="kaiming", key=None):
        self.in_channels = in_channels
        self.out_channels = out_channels
        self.kernel_size = (kernel_size, kernel_size)
        self.stride = (stride, stride)
        self.padding = padding
        fan_in = in_channels * kernel_size * kernel_size
        if key is None:
            key = jax.random.PRNGKey(0)
        if initial == "kaiming":
            # torch.nn.init.kaiming_uniform_ with a=0: bound = sqrt(6 / fan_in)
            bound = math.sqrt(6.0 / fan_in)
            self.weight = jax.random.uniform(
                key, (out_channels, fan_in), jnp.float32, -bound, bound)
        elif initial == "uniform":
            self.weight = jax.random.uniform(
                key, (out_channels, fan_in), jnp.float32, 0.0, 1.0)
        else:
            raise ValueError("RBF_Conv2d initial error")
        _vmem_capacity_bytes()  # prime the (cached) hardware query outside jit
        # TODO(synk): is_weight_cdist=True branch (per-channel weighted cdist)
        # is not exercised by the default forward and is not implemented here.

    @functools.partial(jax.jit, static_argnums=0)
    def __call__(self, x):
        kh, kw = self.kernel_size
        sh, sw = self.stride
        # TODO(synk): the materialized im2col still inflates HBM reads by ~kh*kw;
        # a fused in-kernel unfold (manual halo-DMA of NCHW tiles + in-VMEM window
        # assembly) would remove it, but the required non-128-aligned reshapes
        # don't lower cleanly for arbitrary Wo/stride, so it stays wrapper-side.
        windows, Ho, Wo = _unfold_nchw(x, kh, kw, sh, sw, self.padding)  # (N, K, L)
        windows = windows.astype(jnp.float32)
        N, K, L = windows.shape
        O = self.out_channels

        weight = self.weight.astype(jnp.float32)
        w2 = jnp.sum(weight * weight, axis=-1, keepdims=True)       # (O, 1), hoisted

        # Small-L guard: keep the output lane dim >= 128 (lane-dense stores).
        L_eff = L
        if L < 128:
            windows = jnp.pad(windows, ((0, 0), (0, 0), (0, 128 - L)))
            L_eff = 128

        use_bf16 = O >= 128  # compute-bound regime -> bf16 MXU operands, f32 acc
        tile_m = _choose_tile_m(L_eff, K, O, _vmem_capacity_bytes())
        dist = _rbf_distances_pallas(windows, weight, w2,
                                     tile_m=tile_m, use_bf16=use_bf16)  # (N, O, L_eff)
        if L_eff != L:
            dist = dist[:, :, :L]
        return dist.reshape(N, O, Ho, Wo)


# ----------------------------------------------------------------------------
# Demo / self-check
# ----------------------------------------------------------------------------
if __name__ == "__main__":
    key = jax.random.PRNGKey(0)
    kx, kw_ = jax.random.split(key)

    N, C, H, W = 2, 4, 16, 16
    out_channels, ksize, stride, padding = 8, 3, 1, 0

    x = jax.random.normal(kx, (N, C, H, W), jnp.float32)

    mod = RBFConv2dPallas(C, out_channels, ksize, stride=stride,
                          padding=padding, initial="kaiming", key=kw_)

    out = mod(x)
    out = jax.block_until_ready(out)

    # Reference (pure JAX) check of the cdist semantics.
    cols_ref, Ho, Wo = _unfold_nchw(x, ksize, ksize, stride, stride, padding)  # (N,K,L)
    diff = cols_ref[:, None, :, :] - mod.weight[None, :, :, None]              # (N,O,K,L)
    ref = jnp.sqrt(jnp.sum(diff * diff, axis=2))                               # (N,O,L)
    ref = ref.reshape(N, out_channels, Ho, Wo)

    assert out.shape == (N, out_channels, Ho, Wo), out.shape
    assert jnp.allclose(out, ref, rtol=1e-4, atol=2e-4), (
        float(jnp.max(jnp.abs(out - ref))))

    print("KERNEL_OK")
</pallas_src>

<mosaic_0001>
module attributes {stable_mosaic.version = 11 : i64} {
  func.func @_rbf_cdist_kernel(%arg0: i32, %arg1: i32, %arg2: memref<1x36x128xf32, #tpu.memory_space<vmem>>, %arg3: memref<8x36xf32, #tpu.memory_space<vmem>>, %arg4: memref<8x1xf32, #tpu.memory_space<vmem>>, %arg5: memref<1x8x128xf32, #tpu.memory_space<vmem>>) attributes {dimension_semantics = [#tpu.dimension_semantics<parallel>, #tpu.dimension_semantics<parallel>], iteration_bounds = array<i64: 2, 2>, scalar_prefetch = 0 : i64, scratch_operands = 0 : i64, tpu.core_type = #tpu.core_type<tc>, window_params = [{transform_indices = @transform_0, window_bounds = array<i64: 1, 36, 128>}, {pipeline_mode = #tpu.pipeline_mode<synchronous>, transform_indices = @transform_1, window_bounds = array<i64: 8, 36>}, {pipeline_mode = #tpu.pipeline_mode<synchronous>, transform_indices = @transform_2, window_bounds = array<i64: 8, 1>}, {transform_indices = @transform_3, window_bounds = array<i64: 1, 8, 128>}]} {
    %c0 = arith.constant 0 : index
    %c0_0 = arith.constant 0 : index
    %c0_1 = arith.constant 0 : index
    %0 = vector.load %arg2[%c0, %c0_0, %c0_1] : memref<1x36x128xf32, #tpu.memory_space<vmem>>, vector<1x36x128xf32>
    %1 = vector.shape_cast %0 : vector<1x36x128xf32> to vector<36x128xf32>
    %c0_2 = arith.constant 0 : index
    %c0_3 = arith.constant 0 : index
    %2 = vector.load %arg3[%c0_2, %c0_3] : memref<8x36xf32, #tpu.memory_space<vmem>>, vector<8x36xf32>
    %3 = arith.mulf %1, %1 : vector<36x128xf32>
    %cst = arith.constant dense<0.000000e+00> : vector<128xf32>
    %4 = vector.multi_reduction <add>, %3, %cst [0] : vector<36x128xf32> to vector<128xf32>
    %5 = vector.shape_cast %4 : vector<128xf32> to vector<1x128xf32>
    %cst_4 = arith.constant dense<0.000000e+00> : vector<8x128xf32>
    %6 = tpu.matmul %2, %1, %cst_4 {dimension_numbers = #tpu.dot_dimension_numbers<[1], [0], [0], [1], [0, 0, 1, 1], [], []>} : vector<8x36xf32>, vector<36x128xf32>, vector<8x128xf32> -> vector<8x128xf32>
    %c0_5 = arith.constant 0 : index
    %c0_6 = arith.constant 0 : index
    %7 = vector.load %arg4[%c0_5, %c0_6] : memref<8x1xf32, #tpu.memory_space<vmem>>, vector<8x1xf32>
    %8 = vector.broadcast %7 : vector<8x1xf32> to vector<8x128xf32>
    %9 = vector.broadcast %5 : vector<1x128xf32> to vector<8x128xf32>
    %10 = arith.addf %8, %9 : vector<8x128xf32>
    %cst_7 = arith.constant 2.000000e+00 : f32
    %11 = vector.broadcast %cst_7 : f32 to vector<8x128xf32>
    %12 = arith.mulf %11, %6 : vector<8x128xf32>
    %13 = arith.subf %10, %12 : vector<8x128xf32>
    %cst_8 = arith.constant 0.000000e+00 : f32
    %14 = vector.broadcast %cst_8 : f32 to vector<8x128xf32>
    %15 = arith.maximumf %13, %14 : vector<8x128xf32>
    %16 = math.sqrt %15 : vector<8x128xf32>
    %c0_9 = arith.constant 0 : index
    %c0_10 = arith.constant 0 : index
    %c0_11 = arith.constant 0 : index
    %17 = vector.load %arg5[%c0_9, %c0_10, %c0_11] : memref<1x8x128xf32, #tpu.memory_space<vmem>>, vector<1x8x128xf32>
    %18 = vector.shape_cast %17 : vector<1x8x128xf32> to vector<8x128xf32>
    %19 = vector.shape_cast %16 : vector<8x128xf32> to vector<1x8x128xf32>
    tpu.vector_store %arg5[%c0_9, %c0_10, %c0_11], %19 {strides = array<i32>} : memref<1x8x128xf32, #tpu.memory_space<vmem>>, vector<1x8x128xf32>,
    return
  }
  func.func @transform_0(%arg0: i32, %arg1: i32) -> (i32, i32, i32) {
    %c0_i32 = arith.constant 0 : i32
    %c0_i32_0 = arith.constant 0 : i32
    return %arg0, %c0_i32, %arg1 : i32, i32, i32
  }
  func.func @transform_1(%arg0: i32, %arg1: i32) -> (i32, i32) {
    %c0_i32 = arith.constant 0 : i32
    %c0_i32_0 = arith.constant 0 : i32
    %c0_i32_1 = arith.constant 0 : i32
    return %c0_i32, %c0_i32_0 : i32, i32
  }
  func.func @transform_2(%arg0: i32, %arg1: i32) -> (i32, i32) {
    %c0_i32 = arith.constant 0 : i32
    %c0_i32_0 = arith.constant 0 : i32
    %c0_i32_1 = arith.constant 0 : i32
    return %c0_i32, %c0_i32_0 : i32, i32
  }
  func.func @transform_3(%arg0: i32, %arg1: i32) -> (i32, i32, i32) {
    %c0_i32 = arith.constant 0 : i32
    %c0_i32_0 = arith.constant 0 : i32
    return %arg0, %c0_i32, %arg1 : i32, i32, i32
  }
}

</mosaic_0001>

<llo_original>
// kernel: a_call__.1
$region0: #{a_call__.1}
  #allocation0 [shape = 'u32[]', space=smem, size = 0x4, offset = 0x4, fixed_abs, tag = 'smem constant byte address 0x4 - core index']
  #allocation1 [shape = 'u32[144,128]{1,0:T(1,128)}', space=vmem, size = 0x12000, scoped, tag = 'internal scratch']
  %s0 = inlined_call_operand.vmem [shape: f32[2,36,196], index: 0, kind: input, shape index: {}]
  %s1 = inlined_call_operand.vmem [shape: f32[8,36], index: 1, kind: input, shape index: {}]
  %s2 = inlined_call_operand.vmem [shape: f32[8,1], index: 2, kind: input, shape index: {}]
  %s3 = inlined_call_operand.vmem [shape: f32[2,8,196], index: 3, kind: output, shape index: {}]
  %s4 = sld [smem:[#allocation0]]
  $region83: #{a_call__.1} parent=0
    _
  %s6 = ssub.s32 1, %s4
  %s7 = scalar_select 0, %s6, %s4
  $region1: #{a_call__.1} parent=0
    #allocation2 [shape = 'u8[40960]{0}', space=vmem, size = 0xa000, scoped, tag = 'input window, operand 0']
    loop: start=0, step=1, limit=6
    $region2: #{a_call__.1} parent=1 // loop_pre_header
      _
    $region3: #{a_call__.1} parent=1 // loop_header
      %s9 = sphi 0, %s13
      %p10 = scmp.ge.s32.totalorder %s9, 6
      %s16 = sphi 0, %s28
      %s17 = sphi 0, %s24
      %s18 = sphi 0, %s16
      %s19 = sphi 0, %s17
      %s20 = sphi 0, %s18
      %s21 = sphi 0, %s19
      %s33 = sphi 0, %s35
      %s36 = sphi 0, %s33
      %s37 = sphi 0, %s36
      %s53 = sphi 0, %s37
      %s57 = sphi 0, %s57
      %s59 = sphi 0, %s57
      %s60 = sphi 0, %s59
      %s74 = sphi 0, %s60
      %s78 = sphi 0, %s78
      %s80 = sphi 0, %s78
      %s81 = sphi 0, %s80
      %s95 = sphi 0, %s81
      %s103 = sphi 0, %s105
      %s106 = sphi 0, %s103
      %s107 = sphi 0, %s106
      %s123 = sphi 0, %s107
    $region4: #{a_call__.1} parent=1 // loop_header_branch
      %12 = sbr.rel (%p10) target = $region8
    $region5: #{a_call__.1} parent=1 // loop_body
      %s14 = ssub.s32 %s9, 1
      %s15 = ssub.s32 %s9, 2
      %s22 = sadd.s32 1, %s17
      %p23 = scmp.ge.s32.totalorder %s22, 2
      %s24 = scalar_select %p23, 0, %s22
      %s25 = sadd.s32 1, %s16
      %s26 = scalar_select %p23, %s25, %s16
      %p27 = scmp.ge.s32.totalorder %s26, 2
      %s28 = scalar_select %p27, 0, %s26
      %s29 = ssub.s32 %s16, %s28
      %s30 = ssub.s32 %s17, %s24
      %s31 = sor.u32 %s29, %s30
      %p32 = scmp.eq.s32.totalorder %s31, 0
      %s34 = sadd.s32 %s33, 1
      %s35 = scalar_select %p32, %s33, %s34
      %p38 = pneg %p32
      %p39 = scmp.eq.s32.totalorder %s9, 3
      %p40 = por %p38, %p39
      %p41 = scmp.ne.s32.totalorder %s33, %s36
      %p42 = scmp.eq.s32.totalorder %s9, 0
      %p43 = por %p41, %p42
      %p44 = scmp.ne.s32.totalorder %s33, %s36
      %p45 = scmp.eq.s32.totalorder %s14, 3
      %p46 = por %p44, %p45
      %p47 = scmp.ne.s32.totalorder %s36, %s37
      %p48 = scmp.eq.s32.totalorder %s14, 0
      %p49 = por %p47, %p48
      %p50 = scmp.ne.s32.totalorder %s36, %s37
      %p51 = scmp.eq.s32.totalorder %s15, 3
      %p52 = por %p50, %p51
      %p54 = scmp.ne.s32.totalorder %s37, %s53
      %p55 = scmp.eq.s32.totalorder %s15, 0
      %p56 = por %p54, %p55
      %s58 = sadd.s32 %s57, 1
      %p61 = scmp.eq.s32.totalorder %s9, 3
      %p62 = scmp.ne.s32.totalorder %s57, %s59
      %p63 = scmp.eq.s32.totalorder %s9, 0
      %p64 = por %p62, %p63
      %p65 = scmp.ne.s32.totalorder %s57, %s59
      %p66 = scmp.eq.s32.totalorder %s14, 3
      %p67 = por %p65, %p66
      %p68 = scmp.ne.s32.totalorder %s59, %s60
      %p69 = scmp.eq.s32.totalorder %s14, 0
      %p70 = por %p68, %p69
      %p71 = scmp.ne.s32.totalorder %s59, %s60
      %p72 = scmp.eq.s32.totalorder %s15, 3
      %p73 = por %p71, %p72
      %p75 = scmp.ne.s32.totalorder %s60, %s74
      %p76 = scmp.eq.s32.totalorder %s15, 0
      %p77 = por %p75, %p76
      %s79 = sadd.s32 %s78, 1
      %p82 = scmp.eq.s32.totalorder %s9, 3
      %p83 = scmp.ne.s32.totalorder %s78, %s80
      %p84 = scmp.eq.s32.totalorder %s9, 0
      %p85 = por %p83, %p84
      %p86 = scmp.ne.s32.totalorder %s78, %s80
      %p87 = scmp.eq.s32.totalorder %s14, 3
      %p88 = por %p86, %p87
      %p89 = scmp.ne.s32.totalorder %s80, %s81
      %p90 = scmp.eq.s32.totalorder %s14, 0
      %p91 = por %p89, %p90
      %p92 = scmp.ne.s32.totalorder %s80, %s81
      %p93 = scmp.eq.s32.totalorder %s15, 3
      %p94 = por %p92, %p93
      %p96 = scmp.ne.s32.totalorder %s81, %s95
      %p97 = scmp.eq.s32.totalorder %s15, 0
      %p98 = por %p96, %p97
      %s99 = ssub.s32 %s16, %s28
      %s100 = ssub.s32 %s17, %s24
      %s101 = sor.u32 %s99, %s100
      %p102 = scmp.eq.s32.totalorder %s101, 0
      %s104 = sadd.s32 %s103, 1
      %s105 = scalar_select %p102, %s103, %s104
      %p108 = pneg %p102
      %p109 = scmp.eq.s32.totalorder %s9, 3
      %p110 = por %p108, %p109
      %p111 = scmp.ne.s32.totalorder %s103, %s106
      %p112 = scmp.eq.s32.totalorder %s9, 0
      %p113 = por %p111, %p112
      %p114 = scmp.ne.s32.totalorder %s103, %s106
      %p115 = scmp.eq.s32.totalorder %s14, 3
      %p116 = por %p114, %p115
      %p117 = scmp.ne.s32.totalorder %s106, %s107
      %p118 = scmp.eq.s32.totalorder %s14, 0
      %p119 = por %p117, %p118
      %p120 = scmp.ne.s32.totalorder %s106, %s107
      %p121 = scmp.eq.s32.totalorder %s15, 3
      %p122 = por %p120, %p121
      %p124 = scmp.ne.s32.totalorder %s107, %s123
      %p125 = scmp.eq.s32.totalorder %s15, 0
      %p126 = por %p124, %p125
      %p127 = scmp.le.s32.totalorder 1, %s9
      %p128 = scmp.lt.s32.totalorder %s9, 5
      %p129 = pnand %p127, %p128
      %p130 = pneg %p129
      // Predicated region
      $region9: #{a_call__.1} parent=5 // pred_check
        _
      $region10: #{a_call__.1} parent=5 // pred_check_branch
        %132 = sbr.rel (%p129) target = $region12
      $region11: #{a_call__.1} parent=5 // pred_region
        %s133 = ssub.s32 %s9, 1
        // Predicated region
        $region13: #{a_call__.1} parent=11 // pred_check
          %p134 = pneg %p70
        $region14: #{a_call__.1} parent=11 // pred_check_branch
          %136 = sbr.rel (%p134) target = $region16
        $region15: #{a_call__.1} parent=11 // pred_region
          _
        $region16: #{a_call__.1} parent=11 // pred_fallthru
          _
        // Predicated region
        $region17: #{a_call__.1} parent=11 // pred_check
          %p137 = pneg %p91
        $region18: #{a_call__.1} parent=11 // pred_check_branch
          %139 = sbr.rel (%p137) target = $region20
        $region19: #{a_call__.1} parent=11 // pred_region
          _
        $region20: #{a_call__.1} parent=11 // pred_fallthru
          _
      $region12: #{a_call__.1} parent=5 // pred_fallthru
        _
      %p140 = scmp.lt.s32.totalorder %s9, 4
      // Predicated region
      $region21: #{a_call__.1} parent=5 // pred_check
        %p141 = pneg %p140
      $region22: #{a_call__.1} parent=5 // pred_check_branch
        %143 = sbr.rel (%p141) target = $region24
      $region23: #{a_call__.1} parent=5 // pred_region
        // Predicated region
        $region25: #{a_call__.1} parent=23 // pred_check
          %p144 = pneg %p43
        $region26: #{a_call__.1} parent=23 // pred_check_branch
          %146 = sbr.rel (%p144) target = $region28
        $region27: #{a_call__.1} parent=23 // pred_region
          %s147 = sand.u32 %s33, 1
          %s148 = sand.u32 %s33, 1
          %s149 = smul.addr %s148, 40
          %s150 = scalar_lea.vmem [#allocation2], %s149
          %s151 = smul.addr %s16, 10
          %s152 = sadd.s32 %s17, %s151
          %s153 = smul.addr %s152, 8
          %s154 = scalar_lea.vmem %s0, %s153
          // Predicated region
          $region29: #{a_call__.1} parent=27 // pred_check
            _
          $region30: #{a_call__.1} parent=27 // pred_check_branch
            %156 = sbr.rel (0) target = $region32
          $region31: #{a_call__.1} parent=27 // pred_region
            // Predicated region
            $region33: #{a_call__.1} parent=31 // pred_check
              _
            $region34: #{a_call__.1} parent=31 // pred_check_branch
              %158 = sbr.rel (0) target = $region36
            $region35: #{a_call__.1} parent=31 // pred_region
              // Predicated region
              $region48: #{a_call__.1} parent=35 // pred_check
                _
              $region49: #{a_call__.1} parent=35 // pred_check_branch
                %182 = sbr.rel (0) target = $region51
              $region50: #{a_call__.1} parent=35 // pred_region
                loop: start=0, step=1, limit=1
                $region52: #{a_call__.1} parent=50 // loop_pre_header
                  _
                $region53: #{a_call__.1} parent=50 // loop_header
                  %s184 = sphi 0, %s188
                  %p185 = scmp.ge.s32.totalorder %s184, 1
                  %s189 = sphi %s154, %s154
                  %s190 = sphi %s150, %s150
                $region54: #{a_call__.1} parent=50 // loop_header_branch
                  %187 = sbr.rel (%p185) target = $region58
                $region55: #{a_call__.1} parent=50 // loop_body
                  %v191 = vld [vmem:[%s189] sm:$0xff]
                  %192 = vst [vmem:[%s190] sm:$0xff] %v191
                  %v193 = vld [vmem:[%s189 + $0x10] sm:$0xff]
                  %194 = vst [vmem:[%s190 + $0x8] sm:$0xff] %v193
                  %v195 = vld [vmem:[%s189 + $0x20] sm:$0xff]
                  %196 = vst [vmem:[%s190 + $0x10] sm:$0xff] %v195
                  %v197 = vld [vmem:[%s189 + $0x30] sm:$0xff]
                  %198 = vst [vmem:[%s190 + $0x18] sm:$0xff] %v197
                  %v199 = vld [vmem:[%s189 + $0x40] sm:$0xff]
                  %200 = vst [vmem:[%s190 + $0x20] sm:$0xff] %v199
                $region56: #{a_call__.1} parent=50 // loop_footer
                  %s188 = sadd.s32 1, %s184
                $region57: #{a_call__.1} parent=50 // loop_footer_branch
                  %183 = sbr.rel target = $region53
                $region58: #{a_call__.1} parent=50 // loop_exit
                  _
              $region51: #{a_call__.1} parent=35 // pred_fallthru
                _
              // Predicated region
              $region59: #{a_call__.1} parent=35 // pred_check
                _
              $region60: #{a_call__.1} parent=35 // pred_check_branch
                %202 = sbr.rel target = $region62
              $region61: #{a_call__.1} parent=35 // pred_region
                _
              $region62: #{a_call__.1} parent=35 // pred_fallthru
                _
            $region36: #{a_call__.1} parent=31 // pred_fallthru
              _
            // Predicated region
            $region37: #{a_call__.1} parent=31 // pred_check
              _
            $region38: #{a_call__.1} parent=31 // pred_check_branch
              %160 = sbr.rel target = $region40
            $region39: #{a_call__.1} parent=31 // pred_region
              %s162 = ssub.s32 256, 1
              loop: start=0, step=1, limit=1
              $region41: #{a_call__.1} parent=39 // loop_pre_header
                _
              $region42: #{a_call__.1} parent=39 // loop_header
                %s164 = sphi 0, %s168
                %p165 = scmp.ge.s32.totalorder %s164, 1
                %s169 = sphi %s154, %s154
                %s170 = sphi %s150, %s150
              $region43: #{a_call__.1} parent=39 // loop_header_branch
                %167 = sbr.rel (%p165) target = $region47
              $region44: #{a_call__.1} parent=39 // loop_body
                %v171 = vld [vmem:[%s169] sm:%s162]
                %172 = vst [vmem:[%s170] sm:%s162] %v171
                %v173 = vld [vmem:[%s169 + $0x10] sm:%s162]
                %174 = vst [vmem:[%s170 + $0x8] sm:%s162] %v173
                %v175 = vld [vmem:[%s169 + $0x20] sm:%s162]
                %176 = vst [vmem:[%s170 + $0x10] sm:%s162] %v175
                %v177 = vld [vmem:[%s169 + $0x30] sm:%s162]
                %178 = vst [vmem:[%s170 + $0x18] sm:%s162] %v177
                %v179 = vld [vmem:[%s169 + $0x40] sm:%s162]
                %180 = vst [vmem:[%s170 + $0x20] sm:%s162] %v179
              $region45: #{a_call__.1} parent=39 // loop_footer
                %s168 = sadd.s32 1, %s164
              $region46: #{a_call__.1} parent=39 // loop_footer_branch
                %163 = sbr.rel target = $region42
              $region47: #{a_call__.1} parent=39 // loop_exit
                _
            $region40: #{a_call__.1} parent=31 // pred_fallthru
              _
          $region32: #{a_call__.1} parent=27 // pred_fallthru
            _
          %203 = vnop
        $region28: #{a_call__.1} parent=23 // pred_fallthru
          _
      $region24: #{a_call__.1} parent=5 // pred_fallthru
        _
      %p204 = scmp.le.s32.totalorder 1, %s9
      %p205 = scmp.lt.s32.totalorder %s9, 5
      %p206 = pnand %p204, %p205
      %p207 = pneg %p206
      // Predicated region
      $region63: #{a_call__.1} parent=5 // pred_check
        _
      $region64: #{a_call__.1} parent=5 // pred_check_branch
        %209 = sbr.rel (%p206) target = $region66
      $region65: #{a_call__.1} parent=5 // pred_region
        %s210 = ssub.s32 %s9, 1
        %s211 = sand.u32 %s36, 1
        %s212 = sand.u32 %s36, 1
        %s213 = smul.addr %s212, 40
        %s214 = scalar_lea.vmem [#allocation2], %s213
        // Predicated region
        $region67: #{a_call__.1} parent=65 // pred_check
          %p215 = pneg %p49
        $region68: #{a_call__.1} parent=65 // pred_check_branch
          %217 = sbr.rel (%p215) target = $region70
        $region69: #{a_call__.1} parent=65 // pred_region
          _
        $region70: #{a_call__.1} parent=65 // pred_fallthru
          _
        %s218 = sand.u32 %s36, 1
        %s219 = sand.u32 %s36, 1
        %s220 = smul.addr %s219, 40
        %s221 = scalar_lea.vmem [#allocation2], %s220
        %p222 = pneg %p49
        %p223 = pneg %p46
        %p224 = pneg %p70
        %p225 = pneg %p67
        %p226 = pneg %p91
        %p227 = pneg %p88
        %p228 = pneg %p119
        %p229 = pneg %p116
        %p230 = scmp.lt.s32.totalorder %s18, 1
        %s231 = scalar_select %p230, %s18, 1
        %p232 = scmp.lt.s32.totalorder %s19, 1
        %s233 = scalar_select %p232, %s19, 1
        %s234 = smul.addr %s231, 2
        %s235 = sadd.s32 %s233, %s234
        %s236 = smul.addr %s235, 8
        %s237 = scalar_lea.vmem %s3, %s236
        %p238 = scmp.lt.s32.totalorder %s18, 1
        %s239 = scalar_select %p238, %s18, 1
        %p240 = scmp.lt.s32.totalorder %s19, 1
        %s241 = scalar_select %p240, %s19, 1
        %s242 = smul.addr %s239, 2
        %s243 = sadd.s32 %s241, %s242
        %s244 = smul.addr %s243, 8
        %s245 = scalar_lea.vmem %s3, %s244
        %v246 = vld [vmem:[%s214] sm:$0xff]
        %v247 = vld [vmem:[%s214 + $0x8] sm:$0xff]
        %v248 = vld [vmem:[%s214 + $0x10] sm:$0xff]
        %v249 = vld [vmem:[%s214 + $0x18] sm:$0xff]
        %v250 = vld [vmem:[%s214 + $0x20] sm:$0xf]
        %v251 = vld [vmem:[%s1] sm:$0xff]
        %v252 = vmul.f32 %v246, %v246
        %v253 = vmul.f32 %v247, %v247
        %v254 = vmul.f32 %v248, %v248
        %v255 = vmul.f32 %v249, %v249
        %v256 = vmul.f32 %v250, %v250
        %v257 = vadd.f32 %v252, %v253
        %v258 = vadd.f32 %v257, %v254
        %v259 = vadd.f32 %v258, %v255
        %vm260 = vcmask 1043456
        %v261 = vsel %vm260, %v256, 0.0
        %v262 = vadd.f32 %v259, %v261
        %v263 = vrot.slane %v262, 4
        %v264 = vadd.f32 %v262, %v263
        %v265 = vrot.slane %v264, 2
        %v266 = vadd.f32 %v264, %v265
        %v267 = vrot.slane %v266, 1
        %v268 = vadd.f32 %v266, %v267
        %vm269 = vcmask 293888
        %v271 = vsel %vm269, %v251, 0
        %v274 = vsel %vm260, %v250, 0
        %276 = vmatprep.subr.mxu0 0.0
        %277 = vmatpush1.msra.mxu0 0.0
        %278 = vmatprep.subr.mxu0 0.0
        %279 = vmatpush1.msra.mxu0 0.0
        %280 = vmatprep.subr.mxu0 0.0
        %281 = vmatpush1.msra.mxu0 0.0
        %282 = vmatprep.subr.mxu0 0.0
        %283 = vmatpush1.msra.mxu0 0.0
        %284 = vmatprep.subr.mxu0 0.0
        %285 = vmatpush1.msra.mxu0 0.0
        %286 = vmatprep.subr.mxu0 0.0
        %287 = vmatpush1.msra.mxu0 0.0
        %288 = vmatprep.subr.mxu0 0.0
        %289 = vmatpush1.msra.mxu0 0.0
        %290 = vmatprep.subr.mxu0 0.0
        %291 = vmatpush1.msra.mxu0 0.0
        %292 = vmatprep.subr.mxu0 0.0
        %293 = vmatpush1.msra.mxu0 0.0
        %294 = vmatprep.subr.mxu0 0.0
        %295 = vmatpush1.msra.mxu0 0.0
        %296 = vmatprep.subr.mxu0 0.0
        %297 = vmatpush1.msra.mxu0 0.0
        %298 = vmatprep.subr.mxu0 0.0
        %299 = vmatpush1.msra.mxu0 %v274
        %300 = vmatprep.subr.mxu0 0.0
        %301 = vmatpush1.msra.mxu0 %v249
        %302 = vmatprep.subr.mxu0 0.0
        %303 = vmatpush1.msra.mxu0 %v248
        %304 = vmatprep.subr.mxu0 0.0
        %305 = vmatpush1.msra.mxu0 %v247
        %306 = vmatprep.subr.mxu0 0.0
        %307 = vmatpush1.msra.mxu0 %v246
        %308 = vmatprep.subr.mxu0 0.0
        %309 = vmatpush2.msra.mxu0 0.0
        %310 = vmatprep.subr.mxu0 0.0
        %311 = vmatpush2.msra.mxu0 0.0
        %312 = vmatprep.subr.mxu0 0.0
        %313 = vmatpush2.msra.mxu0 0.0
        %314 = vmatprep.subr.mxu0 0.0
        %315 = vmatpush2.msra.mxu0 0.0
        %316 = vmatprep.subr.mxu0 0.0
        %317 = vmatpush2.msra.mxu0 0.0
        %318 = vmatprep.subr.mxu0 0.0
        %319 = vmatpush2.msra.mxu0 0.0
        %320 = vmatprep.subr.mxu0 0.0
        %321 = vmatpush2.msra.mxu0 0.0
        %322 = vmatprep.subr.mxu0 0.0
        %323 = vmatpush2.msra.mxu0 0.0
        %324 = vmatprep.subr.mxu0 0.0
        %325 = vmatpush2.msra.mxu0 0.0
        %326 = vmatprep.subr.mxu0 0.0
        %327 = vmatpush2.msra.mxu0 0.0
        %328 = vmatprep.subr.mxu0 0.0
        %329 = vmatpush2.msra.mxu0 0.0
        %330 = vmatprep.subr.mxu0 0.0
        %331 = vmatpush2.msra.mxu0 0.0
        %332 = vmatprep.subr.mxu0 0.0
        %333 = vmatpush2.msra.mxu0 0.0
        %334 = vmatprep.subr.mxu0 0.0
        %335 = vmatpush2.msra.mxu0 0.0
        %336 = vmatprep.subr.mxu0 0.0
        %337 = vmatpush2.msra.mxu0 0.0
        %338 = vmatprep.subr.mxu0 0.0
        %339 = vmatpush2.msra.mxu0 0.0
        %340 = vmatprep.mubr.f32.mxu0 0.0
        %341 = vmatmul.mubr.f32.gmra.mxu0 %v271
        %v342 = vpop.f32.mrf.mxu0
        %v343 = vadd.f32 0.0, %v342
        %v344 = vpop.f32.mrf.mxu0
        %345 = vdwg.mxu0
        %v346 = vld [vmem:[%s2] sm:$0xff]
        %348 = vset.pattern.permute.xlu0 0
        %349 = vperm.xlu0 %348, %v346
        %v350 = vpop.permute.xlu0 %349
        %v352 = vadd.f32 %v350, %v268
        %v353 = vmul.f32 %v343, 2.0
        %v354 = vsub.f32 %v352, %v353
        %v355 = vmax.f32 %v354, 0.0
        %v356 = vrsqrt.pop %v355
        %v357 = vmul.f32 %v355, %v356
        %vm358 = vcmp.eq.f32.partialorder %v355, inf
        %v359 = vsel %vm358, %v355, %v357
        %vm360 = vcmp.eq.f32.partialorder %v355, 0.0
        %v361 = vand.u32 %v355, 2147483648
        %v362 = vsel %vm360, %v361, %v359
        %363 = vst [vmem:[%s245] sm:$0xff] %v362
        %p364 = scmp.lt.s32.totalorder %s18, 1
        %s365 = scalar_select %p364, %s18, 1
        %p366 = scmp.lt.s32.totalorder %s19, 1
        %s367 = scalar_select %p366, %s19, 1
        %s368 = smul.addr %s365, 2
        %s369 = sadd.s32 %s367, %s368
        %s370 = smul.addr %s369, 8
        %s371 = scalar_lea.vmem %s3, %s370
        // Predicated region
        $region71: #{a_call__.1} parent=65 // pred_check
          %p372 = pneg %p116
        $region72: #{a_call__.1} parent=65 // pred_check_branch
          %374 = sbr.rel (%p372) target = $region74
        $region73: #{a_call__.1} parent=65 // pred_region
          _
        $region74: #{a_call__.1} parent=65 // pred_fallthru
          _
      $region66: #{a_call__.1} parent=5 // pred_fallthru
        _
      %p375 = scmp.le.s32.totalorder 2, %s9
      // Predicated region
      $region75: #{a_call__.1} parent=5 // pred_check
        %p376 = pneg %p375
      $region76: #{a_call__.1} parent=5 // pred_check_branch
        %378 = sbr.rel (%p376) target = $region78
      $region77: #{a_call__.1} parent=5 // pred_region
        %s379 = ssub.s32 %s9, 2
        // Predicated region
        $region79: #{a_call__.1} parent=77 // pred_check
          %p380 = pneg %p122
        $region80: #{a_call__.1} parent=77 // pred_check_branch
          %382 = sbr.rel (%p380) target = $region82
        $region81: #{a_call__.1} parent=77 // pred_region
          %p383 = scmp.lt.s32.totalorder %s20, 1
          %s384 = scalar_select %p383, %s20, 1
          %p385 = scmp.lt.s32.totalorder %s21, 1
          %s386 = scalar_select %p385, %s21, 1
          %s387 = smul.addr %s384, 2
          %s388 = sadd.s32 %s386, %s387
          %s389 = smul.addr %s388, 8
          %s390 = scalar_lea.vmem %s3, %s389
        $region82: #{a_call__.1} parent=77 // pred_fallthru
          _
      $region78: #{a_call__.1} parent=5 // pred_fallthru
        _
    $region6: #{a_call__.1} parent=1 // loop_footer
      %s13 = sadd.s32 1, %s9
    $region7: #{a_call__.1} parent=1 // loop_footer_branch
      %8 = sbr.rel target = $region3
    $region8: #{a_call__.1} parent=1 // loop_exit
      _

</llo_original>
